<compile_context>
chip_gen: v7x
topology: tpu7x:2x2x1
jax: 0.10.0
libtpu: 0.0.40
codegen_flags: <defaults>
</compile_context>

<pallas_src>
import functools

import numpy as np
import jax
import jax.numpy as jnp
from jax.experimental import pallas as pl
from jax.experimental.pallas import tpu as pltpu

# Module hyper-parameters (defaults from AdaroundRegTerm.__init__)
ZETA = 1.1
GAMMA = -0.1
ALPHA = 0.01
MAX_ITER = 20000
WARM_RATIO = 0.2
BETA_START = 20.0
BETA_END = 2.0

LANES = 128      # vreg lane width
SUBLANE = 16     # row granularity (covers f32 (8,128) and bf16 (16,128) tiles)

# The collapsed rectified-sigmoid algebra (|2h-1| = min((zeta-gamma)*|tanh(x/2)|, 1))
# relies on zeta + gamma == 1.
assert abs(ZETA + GAMMA - 1.0) < 1e-9, "algebraic simplification needs zeta+gamma==1"


def _cdiv(a, b):
    return -(-a // b)


def _round_up(a, b):
    return _cdiv(a, b) * b


def _num_tensorcores() -> int:
    """Best-effort TensorCore count per chip (2 on v7x, 1 on v5e/v6e)."""
    try:
        info = pltpu.get_tpu_info()
        for attr in ("tensorcores_per_chip", "num_tensorcores", "tensorcore_count"):
            v = getattr(info, attr, None)
            if isinstance(v, int) and v >= 1:
                return 2 if v >= 2 else 1
    except Exception:
        pass
    try:
        kind = (getattr(jax.devices()[0], "device_kind", "") or "").lower()
        if "v7" in kind or "tpu7" in kind:
            return 2
    except Exception:
        pass
    return 1


NCORES = _num_tensorcores()


def _time_decay_beta(t):
    """TimeDecay(t_max=MAX_ITER, decay=WARM_RATIO, beta_start=20, beta_end=2)."""
    start_decay = WARM_RATIO * MAX_ITER
    rel_t = (t - start_decay) / (MAX_ITER - start_decay)
    return BETA_END + 0.5 * (BETA_START - BETA_END) * (1.0 + np.cos(rel_t * np.pi))


@functools.partial(jax.jit, static_argnames=("tile_rows",))
def _round_loss(round_mask, beta, *, tile_rows):
    n = round_mask.size
    flat = jnp.ravel(round_mask)
    rows = _cdiv(n, LANES)
    if n % LANES != 0:
        # Ragged lane tail: pad up to a whole 128-lane row (fused under jit);
        # pad value is irrelevant, padded elements are masked out in-kernel.
        flat = jnp.pad(flat, (0, rows * LANES - n))
    x2 = flat.reshape(rows, LANES)

    # Only split across TensorCores when every core gets in-bounds work.
    ncores = NCORES if rows >= NCORES * SUBLANE else 1

    block_rows = min(int(tile_rows), _round_up(_cdiv(rows, ncores), SUBLANE))
    block_rows = _round_up(block_rows, SUBLANE)
    steps = _cdiv(rows, ncores * block_rows)
    # Static decision: emit the ragged-tail mask only if the grid over-covers.
    needs_mask = (ncores * steps * block_rows * LANES) != n

    def kernel(beta_ref, x_ref, o_ref):
        j = pl.program_id(1)

        @pl.when(j == 0)
        def _():
            o_ref[...] = jnp.zeros_like(o_ref)

        beta_s = beta_ref[0]
        x = x_ref[...].astype(jnp.float32)

        # |2h - 1| = min((zeta - gamma) * |tanh(x/2)|, 1)   [zeta + gamma == 1]
        t = jnp.minimum((ZETA - GAMMA) * jnp.abs(jnp.tanh(0.5 * x)), 1.0)
        # t ** beta via exp(beta * log t); explicit select keeps pow(0, beta) == 0.
        pow_t = jnp.where(
            t > 0.0,
            jnp.exp(beta_s * jnp.log(jnp.maximum(t, 1e-30))),
            0.0,
        )
        val = 1.0 - pow_t

        if needs_mask:
            # Mask out padded lanes / garbage rows of the ragged last block.
            row0 = (pl.program_id(0) * steps + j) * block_rows
            ridx = row0 + jax.lax.broadcasted_iota(jnp.int32, x.shape, 0)
            lidx = jax.lax.broadcasted_iota(jnp.int32, x.shape, 1)
            val = jnp.where(ridx * LANES + lidx < n, val, 0.0)

        # Fold (block_rows, 128) -> (8, 128): tile-aligned reshape + VPU adds,
        # then accumulate into the VMEM-resident output block.
        partial = val.reshape(block_rows // 8, 8, LANES).sum(axis=0)
        o_ref[...] += partial[None]

    partials = pl.pallas_call(
        kernel,
        out_shape=jax.ShapeDtypeStruct((ncores, 8, LANES), jnp.float32),
        grid=(ncores, steps),
        in_specs=[
            pl.BlockSpec(memory_space=pltpu.MemorySpace.SMEM),          # beta
            pl.BlockSpec((block_rows, LANES),
                         lambda c, j: (c * steps + j, 0)),              # mask rows
        ],
        out_specs=pl.BlockSpec((1, 8, LANES), lambda c, j: (c, 0, 0)),
        compiler_params=pltpu.CompilerParams(
            dimension_semantics=(
                (pltpu.CORE_PARALLEL if ncores > 1 else pltpu.ARBITRARY),
                pltpu.ARBITRARY,
            )),
    )(beta, x2)

    # Per-core (8,128) partial sums -> scalar; tiny, done by XLA.
    return ALPHA * jnp.sum(partials)


def adaround_reg_term(round_mask, iteration, *, tile_rows: int = 2048):
    """AdaroundRegTerm.forward(round_mask, iteration).

    NOTE: `iteration` must be a static Python scalar (the warm-up branch and
    the np.cos time-decay are host-side, exactly like the PyTorch module).
    """
    if iteration < MAX_ITER * WARM_RATIO:
        return 0  # matches PyTorch: plain zero during the warm-up phase
    beta = jnp.asarray([_time_decay_beta(iteration)], jnp.float32)
    return _round_loss(round_mask, beta, tile_rows=tile_rows)


def _reference(round_mask, iteration):
    """Pure-JAX reference mirroring the PyTorch forward."""
    if iteration < MAX_ITER * WARM_RATIO:
        return 0
    beta = _time_decay_beta(iteration)
    x = round_mask.astype(jnp.float32)
    h = jnp.clip((ZETA - GAMMA) * jax.nn.sigmoid(x) + GAMMA, 0.0, 1.0)
    return ALPHA * jnp.sum(1.0 - jnp.power(jnp.abs(h - 0.5) * 2.0, beta))


if __name__ == "__main__":
    key = jax.random.PRNGKey(0)
    # round_mask is weight-shaped: small conv weight (O=16, I=8, kh=3, kw=3).
    round_mask = jax.random.normal(key, (16, 8, 3, 3), dtype=jnp.float32)

    # Warm-up phase: must return plain 0 (no kernel launch).
    warm = adaround_reg_term(round_mask, iteration=100)
    assert warm == 0

    # Post-warm-up phase: single ragged block, masked in-kernel.
    iteration = 6000
    loss = jax.block_until_ready(adaround_reg_term(round_mask, iteration))
    ref = jax.block_until_ready(_reference(round_mask, iteration))
    np.testing.assert_allclose(np.asarray(loss), np.asarray(ref),
                               rtol=1e-4, atol=1e-5)

    # Multi-step accumulation path (several row-blocks + ragged last block).
    big_mask = jax.random.normal(jax.random.PRNGKey(0), (64, 64, 3, 3),
                                 dtype=jnp.float32)
    loss_big = jax.block_until_ready(
        adaround_reg_term(big_mask, iteration, tile_rows=64))
    ref_big = jax.block_until_ready(_reference(big_mask, iteration))
    np.testing.assert_allclose(np.asarray(loss_big), np.asarray(ref_big),
                               rtol=1e-4, atol=1e-5)

    print("KERNEL_OK")
</pallas_src>

<mosaic_0001>
module attributes {stable_mosaic.version = 11 : i64} {
  func.func @kernel(%arg0: i32, %arg1: i32, %arg2: memref<1xf32, #tpu.memory_space<smem>>, %arg3: memref<16x128xf32, #tpu.memory_space<vmem>>, %arg4: memref<1x8x128xf32, #tpu.memory_space<vmem>>) attributes {dimension_semantics = [#tpu.dimension_semantics<arbitrary>, #tpu.dimension_semantics<arbitrary>], iteration_bounds = array<i64: 1, 1>, scalar_prefetch = 0 : i64, scratch_operands = 0 : i64, tpu.core_type = #tpu.core_type<tc>, window_params = [{transform_indices = @transform_0, window_bounds = array<i64: 1>}, {transform_indices = @transform_1, window_bounds = array<i64: 16, 128>}, {transform_indices = @transform_2, window_bounds = array<i64: 1, 8, 128>}]} {
    %c0_i32 = arith.constant 0 : i32
    %0 = arith.cmpi eq, %arg1, %c0_i32 : i32
    %1 = arith.extui %0 : i1 to i32
    %c0_i32_0 = arith.constant 0 : i32
    %2 = arith.cmpi ne, %1, %c0_i32_0 : i32
    scf.if %2 {
      %cst_17 = arith.constant 0.000000e+00 : f32
      %45 = vector.broadcast %cst_17 : f32 to vector<1x8x128xf32>
      %c0_18 = arith.constant 0 : index
      %c0_19 = arith.constant 0 : index
      %c0_20 = arith.constant 0 : index
      %46 = vector.load %arg4[%c0_18, %c0_19, %c0_20] : memref<1x8x128xf32, #tpu.memory_space<vmem>>, vector<1x8x128xf32>
      tpu.vector_store %arg4[%c0_18, %c0_19, %c0_20], %45 {strides = array<i32>} : memref<1x8x128xf32, #tpu.memory_space<vmem>>, vector<1x8x128xf32>,
    } else {
    }
    %c0 = arith.constant 0 : index
    %3 = memref.load %arg2[%c0] : memref<1xf32, #tpu.memory_space<smem>>
    %c0_1 = arith.constant 0 : index
    %c0_2 = arith.constant 0 : index
    %4 = vector.load %arg3[%c0_1, %c0_2] : memref<16x128xf32, #tpu.memory_space<vmem>>, vector<16x128xf32>
    %cst = arith.constant 5.000000e-01 : f32
    %5 = vector.broadcast %cst : f32 to vector<16x128xf32>
    %6 = arith.mulf %5, %4 : vector<16x128xf32>
    %7 = math.tanh %6 : vector<16x128xf32>
    %8 = math.absf %7 : vector<16x128xf32>
    %cst_3 = arith.constant 1.200000e+00 : f32
    %9 = vector.broadcast %cst_3 : f32 to vector<16x128xf32>
    %10 = arith.mulf %9, %8 : vector<16x128xf32>
    %cst_4 = arith.constant 1.000000e+00 : f32
    %11 = vector.broadcast %cst_4 : f32 to vector<16x128xf32>
    %12 = arith.minimumf %10, %11 : vector<16x128xf32>
    %cst_5 = arith.constant 0.000000e+00 : f32
    %13 = vector.broadcast %cst_5 : f32 to vector<16x128xf32>
    %14 = arith.cmpf ogt, %12, %13 : vector<16x128xf32>
    %cst_6 = arith.constant 1.000000e-30 : f32
    %15 = vector.broadcast %cst_6 : f32 to vector<16x128xf32>
    %16 = arith.maximumf %12, %15 : vector<16x128xf32>
    %17 = math.log %16 : vector<16x128xf32>
    %18 = vector.broadcast %3 : f32 to vector<16x128xf32>
    %19 = arith.mulf %18, %17 : vector<16x128xf32>
    %20 = math.exp %19 : vector<16x128xf32>
    %cst_7 = arith.constant 0.000000e+00 : f32
    %21 = vector.broadcast %cst_7 : f32 to vector<16x128xf32>
    %22 = arith.select %14, %20, %21 : vector<16x128xi1>, vector<16x128xf32>
    %cst_8 = arith.constant 1.000000e+00 : f32
    %23 = vector.broadcast %cst_8 : f32 to vector<16x128xf32>
    %24 = arith.subf %23, %22 : vector<16x128xf32>
    %c1_i32 = arith.constant 1 : i32
    %25 = arith.muli %arg0, %c1_i32 : i32
    %26 = arith.addi %25, %arg1 : i32
    %c16_i32 = arith.constant 16 : i32
    %27 = arith.muli %26, %c16_i32 : i32
    %28 = tpu.iota {dimensions = array<i32: 0>} : vector<16x128xi32>
    %29 = vector.broadcast %27 : i32 to vector<16x128xi32>
    %30 = arith.addi %29, %28 : vector<16x128xi32>
    %31 = tpu.iota {dimensions = array<i32: 1>} : vector<16x128xi32>
    %c128_i32 = arith.constant 128 : i32
    %32 = vector.broadcast %c128_i32 : i32 to vector<16x128xi32>
    %33 = arith.muli %30, %32 : vector<16x128xi32>
    %34 = arith.addi %33, %31 : vector<16x128xi32>
    %c1152_i32 = arith.constant 1152 : i32
    %35 = vector.broadcast %c1152_i32 : i32 to vector<16x128xi32>
    %36 = arith.cmpi slt, %34, %35 : vector<16x128xi32>
    %cst_9 = arith.constant 0.000000e+00 : f32
    %37 = vector.broadcast %cst_9 : f32 to vector<16x128xf32>
    %38 = arith.select %36, %24, %37 : vector<16x128xi1>, vector<16x128xf32>
    %39 = vector.shape_cast %38 : vector<16x128xf32> to vector<2x8x128xf32>
    %cst_10 = arith.constant dense<0.000000e+00> : vector<8x128xf32>
    %40 = vector.multi_reduction <add>, %39, %cst_10 [0] : vector<2x8x128xf32> to vector<8x128xf32>
    %c0_11 = arith.constant 0 : index
    %c0_12 = arith.constant 0 : index
    %c0_13 = arith.constant 0 : index
    %41 = vector.load %arg4[%c0_11, %c0_12, %c0_13] : memref<1x8x128xf32, #tpu.memory_space<vmem>>, vector<1x8x128xf32>
    %42 = vector.shape_cast %40 : vector<8x128xf32> to vector<1x8x128xf32>
    %43 = arith.addf %41, %42 : vector<1x8x128xf32>
    %c0_14 = arith.constant 0 : index
    %c0_15 = arith.constant 0 : index
    %c0_16 = arith.constant 0 : index
    %44 = vector.load %arg4[%c0_14, %c0_15, %c0_16] : memref<1x8x128xf32, #tpu.memory_space<vmem>>, vector<1x8x128xf32>
    tpu.vector_store %arg4[%c0_14, %c0_15, %c0_16], %43 {strides = array<i32>} : memref<1x8x128xf32, #tpu.memory_space<vmem>>, vector<1x8x128xf32>,
    return
  }
  func.func @transform_0(%arg0: i32, %arg1: i32) -> i32 {
    %c0_i32 = arith.constant 0 : i32
    %c0_i32_0 = arith.constant 0 : i32
    return %c0_i32 : i32
  }
  func.func @transform_1(%arg0: i32, %arg1: i32) -> (i32, i32) {
    %c1_i32 = arith.constant 1 : i32
    %0 = arith.muli %arg0, %c1_i32 : i32
    %1 = arith.addi %0, %arg1 : i32
    %c0_i32 = arith.constant 0 : i32
    %c0_i32_0 = arith.constant 0 : i32
    return %1, %c0_i32 : i32, i32
  }
  func.func @transform_2(%arg0: i32, %arg1: i32) -> (i32, i32, i32) {
    %c0_i32 = arith.constant 0 : i32
    %c0_i32_0 = arith.constant 0 : i32
    %c0_i32_1 = arith.constant 0 : i32
    return %arg0, %c0_i32, %c0_i32_0 : i32, i32, i32
  }
}

</mosaic_0001>

<llo_original>
// kernel: _round_loss.1
$region0: #{_round_loss.1}
  #allocation0 [shape = 'u32[]', space=smem, size = 0x4, offset = 0x4, fixed_abs, tag = 'smem constant byte address 0x4 - core index']
  #allocation1 [shape = 'u32[144,128]{1,0:T(1,128)}', space=vmem, size = 0x12000, scoped, tag = 'internal scratch']
  #allocation2 [shape = 'f32[1]{0:T(128)S(6)}', space=smem, size = 0x200, scoped, tag = 'scoped memory for _round_loss.1']
  %s0 = inlined_call_operand.<no memory space> [shape: f32[1], index: 0, kind: input, shape index: {}]
  %s1 = inlined_call_operand.vmem [shape: f32[9,128], index: 1, kind: input, shape index: {}]
  %s2 = inlined_call_operand.vmem [shape: f32[1,8,128], index: 2, kind: output, shape index: {}]
  %s3 = sld [smem:[#allocation0]]
  $region22: #{_round_loss.1} parent=0
    _
  %s5 = ssub.s32 1, %s3
  %s6 = scalar_select 0, %s5, %s3
  %7 = sst [smem:[#allocation2]] %s0
  // Predicated region
  $region2: #{_round_loss.1} parent=0 // pred_check
    _
  $region3: #{_round_loss.1} parent=0 // pred_check_branch
    %9 = sbr.rel (0) target = $region5
  $region4: #{_round_loss.1} parent=0 // pred_region
    _
  $region5: #{_round_loss.1} parent=0 // pred_fallthru
    _
  // Predicated region
  $region6: #{_round_loss.1} parent=0 // pred_check
    _
  $region7: #{_round_loss.1} parent=0 // pred_check_branch
    %11 = sbr.rel (0) target = $region9
  $region8: #{_round_loss.1} parent=0 // pred_region
    %s12 = sadd.s32 0, 0
    %s13 = smul.u32 2, %s12
    %p14 = scmp.lt.s32.totalorder %s13, 1
    %s15 = scalar_select %p14, %s13, 1
    %s16 = smul.addr %s15, 8
    %s17 = scalar_lea.vmem %s1, %s16
    %s18 = sadd.s32 0, 0
    %s19 = smul.u32 2, %s18
  $region9: #{_round_loss.1} parent=0 // pred_fallthru
    _
  %s20 = sadd.s32 0, 0
  %s21 = smul.u32 2, %s20
  %p22 = scmp.lt.s32.totalorder %s21, 1
  %s23 = scalar_select %p22, %s21, 1
  %s24 = smul.addr %s23, 8
  %s25 = scalar_lea.vmem %s1, %s24
  %s26 = sadd.s32 0, 0
  %s27 = smul.u32 2, %s26
  %p28 = scmp.lt.s32.totalorder %s27, 1
  %s29 = scalar_select %p28, %s27, 1
  %s30 = smul.addr %s29, 8
  %s31 = scalar_lea.vmem %s1, %s30
  %s32 = sadd.s32 0, 0
  %s33 = smul.u32 2, %s32
  %p34 = scmp.eq.s32.totalorder 0, 0
  // Predicated region
  $region10: #{_round_loss.1} parent=0 // pred_check
    %p35 = pneg %p34
  $region11: #{_round_loss.1} parent=0 // pred_check_branch
    %37 = sbr.rel (%p35) target = $region13
  $region12: #{_round_loss.1} parent=0 // pred_region
    %38 = vst [vmem:[%s2] sm:$0xff] 0.0
  $region13: #{_round_loss.1} parent=0 // pred_fallthru
    _
  %s39 = sld [smem:[#allocation2]]
  %v40 = vld [vmem:[%s31] sm:$0xff]
  %v41 = vld [vmem:[%s31 + $0x8] sm:$0xff]
  %v42 = vmul.f32 %v40, 0.5
  %v43 = vmul.f32 %v41, 0.5
  %v44 = vtanh.pop %v42
  %v45 = vtanh.pop %v43
  %v46 = vand.u32 2147483647, %v44
  %v47 = vand.u32 2147483647, %v45
  %v48 = vmul.f32 %v46, 1.2
  %v49 = vmul.f32 %v47, 1.2
  %v50 = vmin.f32 %v48, 1.0
  %v51 = vmin.f32 %v49, 1.0
  %vm52 = vcmp.gt.f32.partialorder %v50, 0.0
  %vm53 = vcmp.gt.f32.partialorder %v51, 0.0
  %v54 = vmax.f32 %v50, 1e-30
  %v55 = vmax.f32 %v51, 1e-30
  %v56 = vlog2.pop %v54
  %v57 = vmul.f32 %v56, 0.6931472
  %v58 = vlog2.pop %v55
  %v59 = vmul.f32 %v58, 0.6931472
  %v60 = vstv %s39
  %v61 = vmul.f32 %v60, %v57
  %v62 = vmul.f32 %v60, %v59
  %v63 = vmul.f32 %v61, 1.442695
  %v64 = vpow.pop %v63
  %v65 = vmul.f32 %v62, 1.442695
  %v66 = vpow.pop %v65
  %v67 = vsel %vm52, %v64, 0.0
  %v68 = vsel %vm53, %v66, 0.0
  %v69 = vsub.f32 1.0, %v67
  %v70 = vsub.f32 1.0, %v68
  %s71 = sadd.s32 0, 0
  %s72 = smul.u32 %s71, 16
  %v73 = vlaneseq
  %v74 = vshrl.u32 %v73, 7
  %v75 = vadd.s32 %v74, 8
  %v76 = vstv %s72
  %v77 = vadd.s32 %v76, %v74
  %v78 = vadd.s32 %v76, %v75
  %v79 = vlaneseq
  %v80 = vand.u32 %v79, 127
  %v81 = vmul.u32 %v77, 128
  %v82 = vmul.u32 %v78, 128
  %v83 = vadd.s32 %v81, %v80
  %v84 = vadd.s32 %v82, %v80
  %vm85 = vcmp.lt.s32.totalorder %v83, 1152
  %vm86 = vcmp.lt.s32.totalorder %v84, 1152
  %v87 = vsel %vm85, %v69, 0.0
  %v88 = vsel %vm86, %v70, 0.0
  %v89 = vadd.f32 %v87, %v88
  %v90 = vld [vmem:[%s2] sm:$0xff]
  %v91 = vadd.f32 %v90, %v89
  %92 = vst [vmem:[%s2] sm:$0xff] %v91
  // Predicated region
  $region14: #{_round_loss.1} parent=0 // pred_check
    _
  $region15: #{_round_loss.1} parent=0 // pred_check_branch
    %94 = sbr.rel (0) target = $region17
  $region16: #{_round_loss.1} parent=0 // pred_region
    _
  $region17: #{_round_loss.1} parent=0 // pred_fallthru
    _
  // Predicated region
  $region18: #{_round_loss.1} parent=0 // pred_check
    _
  $region19: #{_round_loss.1} parent=0 // pred_check_branch
    %96 = sbr.rel (0) target = $region21
  $region20: #{_round_loss.1} parent=0 // pred_region
    _
  $region21: #{_round_loss.1} parent=0 // pred_fallthru
    _

</llo_original>
